<compile_context>
chip_gen: v6e
topology: v6e:2x2x1
jax: 0.10.0
libtpu: 0.0.40
codegen_flags: <defaults>
</compile_context>

<pallas_src>
import functools
import math

import jax
import jax.numpy as jnp
from jax import lax
from jax.experimental import pallas as pl
from jax.experimental.pallas import tpu as pltpu


def _focal_kernel(preds_ref, tgt_ref, out_ref, *, gamma, class_weights,
                  n_inner, block_rows, total_rows, need_row_mask):
    """One grid step over a (C, TR, 128) lane-dense tile of samples.

    preds_ref: (C, TR, W)  logits (bf16 or f32), classes on the leading axis
    tgt_ref:   (TR, W)     int32 targets; -1 == invalid / padded sample
    out_ref:   (1, 2, TR, W) f32 resident per-core accumulator:
               [:, 0] partial loss sums, [:, 1] partial valid counts.
    """
    num_classes = preds_ref.shape[0]
    p = pl.program_id(0)
    i = pl.program_id(1)

    @pl.when(i == 0)
    def _():
        out_ref[...] = jnp.zeros_like(out_ref)

    t = tgt_ref[...]                                    # (TR, W) int32

    if need_row_mask:
        # Grid capacity overruns the real row count: mask out-of-range rows.
        base = (p * n_inner + i) * block_rows
        rows = base + lax.broadcasted_iota(jnp.int32, t.shape, 0)
        row_ok = rows < total_rows
        t = jnp.where(row_ok, t, -1)
    else:
        row_ok = None

    def load_class(c):
        xc = preds_ref[c].astype(jnp.float32)           # (TR, W)
        if row_ok is not None:
            # Sanitize BEFORE exp/log: stale VMEM could hold NaN/Inf and
            # 0 * NaN == NaN would poison the accumulator.
            xc = jnp.where(row_ok, xc, 0.0)
        return xc

    # log-softmax over the (small, static) class axis, fully unrolled: plain
    # full-vreg VALU ops, no cross-lane/sublane reductions.
    x_max = load_class(0)
    for c in range(1, num_classes):
        x_max = jnp.maximum(x_max, load_class(c))

    uniform_w = all(w == class_weights[0] for w in class_weights)

    denom = None
    e_t = None
    x_t = None
    cw_t = None
    for c in range(num_classes):
        xc = load_class(c)
        e_c = jnp.exp(xc - x_max)
        denom = e_c if denom is None else denom + e_c
        sel = t == c
        e_t = jnp.where(sel, e_c, 0.0 if e_t is None else e_t)
        x_t = jnp.where(sel, xc, 0.0 if x_t is None else x_t)
        if not uniform_w:
            cw_t = jnp.where(sel, class_weights[c],
                             0.0 if cw_t is None else cw_t)

    eps = 1e-6
    # log(clip(p, eps, 1-eps)) == clip(log(p), log(eps), log1p(-eps))
    log_p = x_t - x_max - jnp.log(denom)
    log_p = jnp.clip(log_p, math.log(eps), math.log1p(-eps))
    # Reuse the already-computed exp() for p_t instead of a second exp pass.
    p_t = jnp.clip(e_t / denom, eps, 1.0 - eps)

    one_minus = 1.0 - p_t
    g = float(gamma)
    if g.is_integer() and 0.0 <= g <= 8.0:
        gi = int(g)
        if gi == 0:
            focal = jnp.ones_like(one_minus)
        else:
            focal = one_minus
            for _ in range(gi - 1):                      # gamma==2 -> one multiply
                focal = focal * one_minus
    else:
        focal = jnp.exp(g * jnp.log(one_minus))          # one_minus >= eps > 0

    m = (t >= 0).astype(jnp.float32)                     # invalid / padded -> 0

    losses = (-log_p) * focal * m
    if uniform_w:
        if class_weights[0] != 1.0:
            losses = losses * class_weights[0]
    else:
        losses = losses * cw_t

    out_ref[0, 0, :, :] += losses
    out_ref[0, 1, :, :] += m


@functools.partial(
    jax.jit,
    static_argnames=("class_weights", "gamma", "reduction",
                     "rows_per_step", "lanes"))
def _masked_focal_loss_fwd(predictions, targets, valid_mask, *, class_weights,
                           gamma, reduction, rows_per_step, lanes):
    num_classes = predictions.shape[-1]

    if targets.ndim == 3 and targets.shape[-1] == num_classes:
        targets = jnp.argmax(targets, axis=-1)
    elif targets.ndim != 2:
        raise ValueError(
            "Targets must have shape (batch, seq) or (batch, seq, num_classes).")

    # keep bf16 logits in bf16 (halves HBM traffic); cast to f32 in-kernel
    kern_dtype = (jnp.bfloat16 if predictions.dtype == jnp.bfloat16
                  else jnp.float32)
    preds_2d = predictions.reshape(-1, num_classes).astype(kern_dtype)
    tgt_1d = targets.reshape(-1).astype(jnp.int32)
    mask_1d = valid_mask.reshape(-1).astype(bool)
    # Merge the validity mask into the target stream: invalid -> -1.
    tgt_1d = jnp.where(mask_1d, tgt_1d, -1)

    n = preds_2d.shape[0]
    w = lanes
    n_pad = pl.cdiv(n, w) * w
    pad = n_pad - n
    rows = n_pad // w

    # Class-major (lane-dense) layout.
    # TODO(synk): the producing layer should ideally emit class-major logits so
    # this (N, C) -> (C, N) transpose (one HBM pass) disappears entirely.
    preds_cm = preds_2d.T                                # (C, n)
    if pad:
        # <= lanes-1 zero columns; under jit this fuses with the transpose copy.
        preds_cm = jnp.pad(preds_cm, ((0, 0), (0, pad)))
        tgt_1d = jnp.pad(tgt_1d, (0, pad), constant_values=-1)
    preds_3d = preds_cm.reshape(num_classes, rows, w)    # free (bitcast) reshape
    tgt_2d = tgt_1d.reshape(rows, w)

    # Rows per grid step (second-minor block dim): multiple of the sublane tile
    # unless it equals the full row count (always legal).
    sub = 8 if kern_dtype == jnp.float32 else 16
    tr = int(rows_per_step)
    if tr >= rows:
        tr = rows
    else:
        tr = max(sub, (tr // sub) * sub)
        if tr >= rows:
            tr = rows

    nblocks = pl.cdiv(rows, tr)
    n_par = 2 if nblocks >= 2 else 1          # megacore split; harmless on 1-TC chips
    n_inner = pl.cdiv(nblocks, n_par)
    last_blk = nblocks - 1
    need_row_mask = (n_par * n_inner * tr) > rows

    kernel = functools.partial(
        _focal_kernel, gamma=gamma, class_weights=class_weights,
        n_inner=n_inner, block_rows=tr, total_rows=rows,
        need_row_mask=need_row_mask)

    itemsize = 2 if kern_dtype == jnp.bfloat16 else 4
    cost = pl.CostEstimate(
        flops=int(n_pad * (12 * num_classes + 30)),
        transcendentals=int(n_pad * (num_classes + 2)),
        bytes_accessed=int(n_pad * (num_classes * itemsize + 4)
                           + n_par * 2 * tr * w * 4))

    parts = pl.pallas_call(
        kernel,
        out_shape=jax.ShapeDtypeStruct((n_par, 2, tr, w), jnp.float32),
        grid_spec=pltpu.PrefetchScalarGridSpec(
            num_scalar_prefetch=0,
            grid=(n_par, n_inner),
            in_specs=[
                pl.BlockSpec(
                    (num_classes, tr, w),
                    lambda p, i: (0, jnp.minimum(p * n_inner + i, last_blk), 0)),
                pl.BlockSpec(
                    (tr, w),
                    lambda p, i: (jnp.minimum(p * n_inner + i, last_blk), 0)),
            ],
            out_specs=pl.BlockSpec((1, 2, tr, w), lambda p, i: (p, 0, 0, 0)),
        ),
        compiler_params=pltpu.CompilerParams(
            dimension_semantics=("parallel", "arbitrary"),
            vmem_limit_bytes=32 * 1024 * 1024),
        cost_estimate=cost,
    )(preds_3d, tgt_2d)

    loss_sum = jnp.sum(parts[:, 0])
    count = jnp.sum(parts[:, 1])
    if reduction == "sum":
        loss = loss_sum
    else:  # mean over valid samples (matches torch module: sum / valid_mask.sum())
        loss = loss_sum / jnp.maximum(count, 1.0)
    # "no valid targets -> zero loss" semantics
    return jnp.where(count > 0, loss, jnp.zeros_like(loss))


class MaskedFocalLossPallas:
    """JAX/Pallas forward-pass equivalent of pgsui MaskedFocalLoss."""

    def __init__(self, class_weights=None, alpha=None, gamma: float = 2.0,
                 reduction: str = "mean", verbose: int = 0, debug: bool = False,
                 rows_per_step: int = 512, lanes: int = 128):
        if reduction not in ("mean", "sum"):
            raise ValueError(
                f"Unsupported reduction type: {reduction}. Use 'mean' or 'sum'.")
        if isinstance(class_weights, dict):
            class_weights = list(class_weights.values())
        if class_weights is not None:
            class_weights = [float(wgt) for wgt in class_weights]
        self.class_weights = class_weights
        if alpha is not None and not isinstance(alpha, (int, float)):
            alpha = [float(a) for a in alpha]
        self.alpha = alpha
        self.gamma = float(gamma)
        self.reduction = reduction
        self.rows_per_step = int(rows_per_step)
        self.lanes = int(lanes)
        # TODO(synk): LoggerManager / verbose / debug logging from the PyTorch
        # module has no Pallas equivalent and is intentionally omitted.

    def _per_class_weight(self, num_classes):
        """Combined per-class weight (class_weights * alpha) as static floats."""
        if self.class_weights is None:
            cw = [1.0] * num_classes
        else:
            if len(self.class_weights) != num_classes:
                raise ValueError("Mismatch in class_weights size.")
            cw = list(self.class_weights)
        if self.alpha is None:
            pass
        elif isinstance(self.alpha, (int, float)):
            cw = [wgt * float(self.alpha) for wgt in cw]
        elif isinstance(self.alpha, (list, tuple)):
            if len(self.alpha) != num_classes:
                raise ValueError("Invalid alpha length.")
            cw = [wgt * a for wgt, a in zip(cw, self.alpha)]
        else:
            raise ValueError(f"Invalid alpha type: {type(self.alpha)}.")
        return tuple(cw)

    def __call__(self, predictions, targets, valid_mask=None):
        predictions = jnp.asarray(predictions)
        targets = jnp.asarray(targets)
        num_classes = predictions.shape[-1]
        cw = self._per_class_weight(num_classes)
        if valid_mask is None:
            mask_shape = targets.shape if targets.ndim == 2 else targets.shape[:-1]
            valid_mask = jnp.ones(mask_shape, dtype=bool)
        else:
            valid_mask = jnp.asarray(valid_mask)
        return _masked_focal_loss_fwd(
            predictions, targets, valid_mask,
            class_weights=cw, gamma=self.gamma, reduction=self.reduction,
            rows_per_step=self.rows_per_step, lanes=self.lanes)


def _reference_loss(predictions, targets, valid_mask, class_weights, alpha,
                    gamma, reduction):
    """Pure-JAX reference mirroring the PyTorch forward (incl. class weights)."""
    num_classes = predictions.shape[-1]
    if targets.ndim == 3 and targets.shape[-1] == num_classes:
        targets = jnp.argmax(targets, axis=-1)
    preds_2d = predictions.reshape(-1, num_classes).astype(jnp.float32)
    tgts = targets.reshape(-1).astype(jnp.int32)
    mask = jnp.asarray(valid_mask).reshape(-1).astype(jnp.float32)

    probs = jax.nn.softmax(preds_2d, axis=-1)
    p_t = probs[jnp.arange(tgts.shape[0]), tgts]
    p_t = jnp.clip(p_t, 1e-6, 1 - 1e-6)

    if alpha is None:
        alpha_factor = 1.0
    elif isinstance(alpha, (float, int)):
        alpha_factor = float(alpha)
    else:
        alpha_factor = jnp.asarray(alpha, jnp.float32)[tgts]

    sample = -jnp.log(p_t) * (1.0 - p_t) ** gamma * alpha_factor
    if class_weights is not None:
        sample = sample * jnp.asarray(class_weights, jnp.float32)[tgts]
    sample = sample * mask

    if reduction == "sum":
        return sample.sum()
    return sample.sum() / jnp.maximum(mask.sum(), 1.0)


if __name__ == "__main__":
    key = jax.random.PRNGKey(0)
    k1, k2, k3, k4, k5, k6 = jax.random.split(key, 6)

    batch, seq, num_classes = 2, 8, 5
    predictions = jax.random.normal(k1, (batch, seq, num_classes), dtype=jnp.float32)
    targets = jax.random.randint(k2, (batch, seq), 0, num_classes, dtype=jnp.int32)
    valid_mask = jax.random.bernoulli(k3, 0.8, (batch, seq))

    # 1) scalar alpha, integer-gamma fast path, mean reduction
    crit = MaskedFocalLossPallas(alpha=0.25, gamma=2.0, reduction="mean")
    loss = jax.block_until_ready(crit(predictions, targets, valid_mask))
    ref = _reference_loss(predictions, targets, valid_mask, None, 0.25, 2.0, "mean")
    assert jnp.allclose(loss, ref, rtol=1e-4, atol=1e-6), (loss, ref)

    # 2) per-class alpha + class weights, fractional gamma, sum reduction
    cls_w = [1.0, 2.0, 0.5, 1.5, 1.0]
    alpha_l = [0.25, 0.5, 0.75, 0.25, 0.5]
    crit2 = MaskedFocalLossPallas(class_weights=cls_w, alpha=alpha_l,
                                  gamma=1.5, reduction="sum")
    loss2 = jax.block_until_ready(crit2(predictions, targets, valid_mask))
    ref2 = _reference_loss(predictions, targets, valid_mask, cls_w, alpha_l,
                           1.5, "sum")
    assert jnp.allclose(loss2, ref2, rtol=1e-4, atol=1e-6), (loss2, ref2)

    # 3) no valid targets -> zero loss
    zero_mask = jnp.zeros((batch, seq), dtype=bool)
    loss3 = jax.block_until_ready(crit(predictions, targets, zero_mask))
    assert jnp.allclose(loss3, 0.0, atol=1e-7), loss3

    # 4) multi-step grid: ragged last block, clamped overflow step, parallel split
    b4, s4 = 5, 500  # 2500 samples -> 20 rows of 128 lanes (60 lane-padded)
    preds4 = jax.random.normal(k4, (b4, s4, num_classes), dtype=jnp.float32)
    tgts4 = jax.random.randint(k5, (b4, s4), 0, num_classes, dtype=jnp.int32)
    mask4 = jax.random.bernoulli(k6, 0.7, (b4, s4))
    crit4 = MaskedFocalLossPallas(class_weights=cls_w, alpha=0.25, gamma=2.0,
                                  reduction="mean", rows_per_step=8)
    loss4 = jax.block_until_ready(crit4(preds4, tgts4, mask4))
    ref4 = _reference_loss(preds4, tgts4, mask4, cls_w, 0.25, 2.0, "mean")
    assert jnp.allclose(loss4, ref4, rtol=1e-4, atol=1e-6), (loss4, ref4)

    # 5) bf16 logits path (kernel math stays f32)
    preds_bf = preds4.astype(jnp.bfloat16)
    loss5 = jax.block_until_ready(crit4(preds_bf, tgts4, mask4))
    ref5 = _reference_loss(preds_bf.astype(jnp.float32), tgts4, mask4, cls_w,
                           0.25, 2.0, "mean")
    assert jnp.allclose(loss5, ref5, rtol=1e-4, atol=1e-6), (loss5, ref5)

    print("KERNEL_OK")
</pallas_src>

<mosaic_0001>
module attributes {stable_mosaic.version = 11 : i64} {
  func.func @_focal_kernel(%arg0: i32, %arg1: i32, %arg2: memref<5x1x128xf32, #tpu.memory_space<vmem>>, %arg3: memref<1x128xi32, #tpu.memory_space<vmem>>, %arg4: memref<1x2x1x128xf32, #tpu.memory_space<vmem>>) attributes {dimension_semantics = [#tpu.dimension_semantics<parallel>, #tpu.dimension_semantics<arbitrary>], iteration_bounds = array<i64: 1, 1>, scalar_prefetch = 0 : i64, scratch_operands = 0 : i64, tpu.core_type = #tpu.core_type<tc>, window_params = [{transform_indices = @transform_0, window_bounds = array<i64: 5, 1, 128>}, {transform_indices = @transform_1, window_bounds = array<i64: 1, 128>}, {transform_indices = @transform_2, window_bounds = array<i64: 1, 2, 1, 128>}]} {
    %c0_i32 = arith.constant 0 : i32
    %0 = arith.cmpi eq, %arg1, %c0_i32 : i32
    %1 = arith.extui %0 : i1 to i32
    %c0_i32_0 = arith.constant 0 : i32
    %2 = arith.cmpi ne, %1, %c0_i32_0 : i32
    scf.if %2 {
      %cst_54 = arith.constant 0.000000e+00 : f32
      %101 = vector.broadcast %cst_54 : f32 to vector<1x2x1x128xf32>
      %c0_55 = arith.constant 0 : index
      %c0_56 = arith.constant 0 : index
      %c0_57 = arith.constant 0 : index
      %c0_58 = arith.constant 0 : index
      %102 = vector.load %arg4[%c0_55, %c0_56, %c0_57, %c0_58] : memref<1x2x1x128xf32, #tpu.memory_space<vmem>>, vector<1x2x1x128xf32>
      tpu.vector_store %arg4[%c0_55, %c0_56, %c0_57, %c0_58], %101 {strides = array<i32>} : memref<1x2x1x128xf32, #tpu.memory_space<vmem>>, vector<1x2x1x128xf32>,
    } else {
    }
    %c0 = arith.constant 0 : index
    %c0_1 = arith.constant 0 : index
    %3 = vector.load %arg3[%c0, %c0_1] : memref<1x128xi32, #tpu.memory_space<vmem>>, vector<1x128xi32>
    %c0_2 = arith.constant 0 : index
    %c0_3 = arith.constant 0 : index
    %c0_4 = arith.constant 0 : index
    %4 = vector.load %arg2[%c0_2, %c0_3, %c0_4] : memref<5x1x128xf32, #tpu.memory_space<vmem>>, vector<1x1x128xf32>
    %5 = vector.shape_cast %4 : vector<1x1x128xf32> to vector<1x128xf32>
    %c1 = arith.constant 1 : index
    %c0_5 = arith.constant 0 : index
    %c0_6 = arith.constant 0 : index
    %6 = vector.load %arg2[%c1, %c0_5, %c0_6] : memref<5x1x128xf32, #tpu.memory_space<vmem>>, vector<1x1x128xf32>
    %7 = vector.shape_cast %6 : vector<1x1x128xf32> to vector<1x128xf32>
    %8 = arith.maximumf %5, %7 : vector<1x128xf32>
    %c2 = arith.constant 2 : index
    %c0_7 = arith.constant 0 : index
    %c0_8 = arith.constant 0 : index
    %9 = vector.load %arg2[%c2, %c0_7, %c0_8] : memref<5x1x128xf32, #tpu.memory_space<vmem>>, vector<1x1x128xf32>
    %10 = vector.shape_cast %9 : vector<1x1x128xf32> to vector<1x128xf32>
    %11 = arith.maximumf %8, %10 : vector<1x128xf32>
    %c3 = arith.constant 3 : index
    %c0_9 = arith.constant 0 : index
    %c0_10 = arith.constant 0 : index
    %12 = vector.load %arg2[%c3, %c0_9, %c0_10] : memref<5x1x128xf32, #tpu.memory_space<vmem>>, vector<1x1x128xf32>
    %13 = vector.shape_cast %12 : vector<1x1x128xf32> to vector<1x128xf32>
    %14 = arith.maximumf %11, %13 : vector<1x128xf32>
    %c4 = arith.constant 4 : index
    %c0_11 = arith.constant 0 : index
    %c0_12 = arith.constant 0 : index
    %15 = vector.load %arg2[%c4, %c0_11, %c0_12] : memref<5x1x128xf32, #tpu.memory_space<vmem>>, vector<1x1x128xf32>
    %16 = vector.shape_cast %15 : vector<1x1x128xf32> to vector<1x128xf32>
    %17 = arith.maximumf %14, %16 : vector<1x128xf32>
    %c0_13 = arith.constant 0 : index
    %c0_14 = arith.constant 0 : index
    %c0_15 = arith.constant 0 : index
    %18 = vector.load %arg2[%c0_13, %c0_14, %c0_15] : memref<5x1x128xf32, #tpu.memory_space<vmem>>, vector<1x1x128xf32>
    %19 = vector.shape_cast %18 : vector<1x1x128xf32> to vector<1x128xf32>
    %20 = arith.subf %19, %17 : vector<1x128xf32>
    %21 = math.exp %20 : vector<1x128xf32>
    %c0_i32_16 = arith.constant 0 : i32
    %22 = vector.broadcast %c0_i32_16 : i32 to vector<1x128xi32>
    %23 = arith.cmpi eq, %3, %22 : vector<1x128xi32>
    %cst = arith.constant 0.000000e+00 : f32
    %24 = vector.broadcast %cst : f32 to vector<1x128xf32>
    %25 = arith.select %23, %21, %24 : vector<1x128xi1>, vector<1x128xf32>
    %cst_17 = arith.constant 0.000000e+00 : f32
    %26 = vector.broadcast %cst_17 : f32 to vector<1x128xf32>
    %27 = arith.select %23, %19, %26 : vector<1x128xi1>, vector<1x128xf32>
    %c1_18 = arith.constant 1 : index
    %c0_19 = arith.constant 0 : index
    %c0_20 = arith.constant 0 : index
    %28 = vector.load %arg2[%c1_18, %c0_19, %c0_20] : memref<5x1x128xf32, #tpu.memory_space<vmem>>, vector<1x1x128xf32>
    %29 = vector.shape_cast %28 : vector<1x1x128xf32> to vector<1x128xf32>
    %30 = arith.subf %29, %17 : vector<1x128xf32>
    %31 = math.exp %30 : vector<1x128xf32>
    %32 = arith.addf %21, %31 : vector<1x128xf32>
    %c1_i32 = arith.constant 1 : i32
    %33 = vector.broadcast %c1_i32 : i32 to vector<1x128xi32>
    %34 = arith.cmpi eq, %3, %33 : vector<1x128xi32>
    %35 = arith.select %34, %31, %25 : vector<1x128xi1>, vector<1x128xf32>
    %36 = arith.select %34, %29, %27 : vector<1x128xi1>, vector<1x128xf32>
    %c2_21 = arith.constant 2 : index
    %c0_22 = arith.constant 0 : index
    %c0_23 = arith.constant 0 : index
    %37 = vector.load %arg2[%c2_21, %c0_22, %c0_23] : memref<5x1x128xf32, #tpu.memory_space<vmem>>, vector<1x1x128xf32>
    %38 = vector.shape_cast %37 : vector<1x1x128xf32> to vector<1x128xf32>
    %39 = arith.subf %38, %17 : vector<1x128xf32>
    %40 = math.exp %39 : vector<1x128xf32>
    %41 = arith.addf %32, %40 : vector<1x128xf32>
    %c2_i32 = arith.constant 2 : i32
    %42 = vector.broadcast %c2_i32 : i32 to vector<1x128xi32>
    %43 = arith.cmpi eq, %3, %42 : vector<1x128xi32>
    %44 = arith.select %43, %40, %35 : vector<1x128xi1>, vector<1x128xf32>
    %45 = arith.select %43, %38, %36 : vector<1x128xi1>, vector<1x128xf32>
    %c3_24 = arith.constant 3 : index
    %c0_25 = arith.constant 0 : index
    %c0_26 = arith.constant 0 : index
    %46 = vector.load %arg2[%c3_24, %c0_25, %c0_26] : memref<5x1x128xf32, #tpu.memory_space<vmem>>, vector<1x1x128xf32>
    %47 = vector.shape_cast %46 : vector<1x1x128xf32> to vector<1x128xf32>
    %48 = arith.subf %47, %17 : vector<1x128xf32>
    %49 = math.exp %48 : vector<1x128xf32>
    %50 = arith.addf %41, %49 : vector<1x128xf32>
    %c3_i32 = arith.constant 3 : i32
    %51 = vector.broadcast %c3_i32 : i32 to vector<1x128xi32>
    %52 = arith.cmpi eq, %3, %51 : vector<1x128xi32>
    %53 = arith.select %52, %49, %44 : vector<1x128xi1>, vector<1x128xf32>
    %54 = arith.select %52, %47, %45 : vector<1x128xi1>, vector<1x128xf32>
    %c4_27 = arith.constant 4 : index
    %c0_28 = arith.constant 0 : index
    %c0_29 = arith.constant 0 : index
    %55 = vector.load %arg2[%c4_27, %c0_28, %c0_29] : memref<5x1x128xf32, #tpu.memory_space<vmem>>, vector<1x1x128xf32>
    %56 = vector.shape_cast %55 : vector<1x1x128xf32> to vector<1x128xf32>
    %57 = arith.subf %56, %17 : vector<1x128xf32>
    %58 = math.exp %57 : vector<1x128xf32>
    %59 = arith.addf %50, %58 : vector<1x128xf32>
    %c4_i32 = arith.constant 4 : i32
    %60 = vector.broadcast %c4_i32 : i32 to vector<1x128xi32>
    %61 = arith.cmpi eq, %3, %60 : vector<1x128xi32>
    %62 = arith.select %61, %58, %53 : vector<1x128xi1>, vector<1x128xf32>
    %63 = arith.select %61, %56, %54 : vector<1x128xi1>, vector<1x128xf32>
    %64 = arith.subf %63, %17 : vector<1x128xf32>
    %65 = math.log %59 : vector<1x128xf32>
    %66 = arith.subf %64, %65 : vector<1x128xf32>
    %cst_30 = arith.constant -13.8155107 : f32
    %cst_31 = arith.constant -1.00000045E-6 : f32
    %67 = vector.broadcast %cst_30 : f32 to vector<1x128xf32>
    %68 = arith.maximumf %67, %66 : vector<1x128xf32>
    %69 = vector.broadcast %cst_31 : f32 to vector<1x128xf32>
    %70 = arith.minimumf %69, %68 : vector<1x128xf32>
    %71 = arith.divf %62, %59 : vector<1x128xf32>
    %cst_32 = arith.constant 9.99999997E-7 : f32
    %cst_33 = arith.constant 0.999998986 : f32
    %72 = vector.broadcast %cst_32 : f32 to vector<1x128xf32>
    %73 = arith.maximumf %72, %71 : vector<1x128xf32>
    %74 = vector.broadcast %cst_33 : f32 to vector<1x128xf32>
    %75 = arith.minimumf %74, %73 : vector<1x128xf32>
    %cst_34 = arith.constant 1.000000e+00 : f32
    %76 = vector.broadcast %cst_34 : f32 to vector<1x128xf32>
    %77 = arith.subf %76, %75 : vector<1x128xf32>
    %78 = arith.mulf %77, %77 : vector<1x128xf32>
    %c0_i32_35 = arith.constant 0 : i32
    %79 = vector.broadcast %c0_i32_35 : i32 to vector<1x128xi32>
    %80 = arith.cmpi sge, %3, %79 : vector<1x128xi32>
    %81 = arith.extui %80 : vector<1x128xi1> to vector<1x128xi32>
    %82 = arith.sitofp %81 : vector<1x128xi32> to vector<1x128xf32>
    %cst_36 = arith.constant 0.000000e+00 : f32
    %83 = vector.broadcast %cst_36 : f32 to vector<1x128xf32>
    %84 = arith.subf %83, %70 : vector<1x128xf32>
    %85 = arith.mulf %84, %78 : vector<1x128xf32>
    %86 = arith.mulf %85, %82 : vector<1x128xf32>
    %cst_37 = arith.constant 2.500000e-01 : f32
    %87 = vector.broadcast %cst_37 : f32 to vector<1x128xf32>
    %88 = arith.mulf %86, %87 : vector<1x128xf32>
    %c0_38 = arith.constant 0 : index
    %c0_39 = arith.constant 0 : index
    %c0_40 = arith.constant 0 : index
    %c0_41 = arith.constant 0 : index
    %89 = vector.load %arg4[%c0_38, %c0_39, %c0_40, %c0_41] : memref<1x2x1x128xf32, #tpu.memory_space<vmem>>, vector<1x1x1x128xf32>
    %90 = vector.shape_cast %89 : vector<1x1x1x128xf32> to vector<1x128xf32>
    %91 = arith.addf %90, %88 : vector<1x128xf32>
    %c0_42 = arith.constant 0 : index
    %c0_43 = arith.constant 0 : index
    %c0_44 = arith.constant 0 : index
    %c0_45 = arith.constant 0 : index
    %92 = vector.load %arg4[%c0_42, %c0_43, %c0_44, %c0_45] : memref<1x2x1x128xf32, #tpu.memory_space<vmem>>, vector<1x1x1x128xf32>
    %93 = vector.shape_cast %92 : vector<1x1x1x128xf32> to vector<1x128xf32>
    %94 = vector.shape_cast %91 : vector<1x128xf32> to vector<1x1x1x128xf32>
    tpu.vector_store %arg4[%c0_42, %c0_43, %c0_44, %c0_45], %94 {strides = array<i32>} : memref<1x2x1x128xf32, #tpu.memory_space<vmem>>, vector<1x1x1x128xf32>,
    %c0_46 = arith.constant 0 : index
    %c1_47 = arith.constant 1 : index
    %c0_48 = arith.constant 0 : index
    %c0_49 = arith.constant 0 : index
    %95 = vector.load %arg4[%c0_46, %c1_47, %c0_48, %c0_49] : memref<1x2x1x128xf32, #tpu.memory_space<vmem>>, vector<1x1x1x128xf32>
    %96 = vector.shape_cast %95 : vector<1x1x1x128xf32> to vector<1x128xf32>
    %97 = arith.addf %96, %82 : vector<1x128xf32>
    %c0_50 = arith.constant 0 : index
    %c1_51 = arith.constant 1 : index
    %c0_52 = arith.constant 0 : index
    %c0_53 = arith.constant 0 : index
    %98 = vector.load %arg4[%c0_50, %c1_51, %c0_52, %c0_53] : memref<1x2x1x128xf32, #tpu.memory_space<vmem>>, vector<1x1x1x128xf32>
    %99 = vector.shape_cast %98 : vector<1x1x1x128xf32> to vector<1x128xf32>
    %100 = vector.shape_cast %97 : vector<1x128xf32> to vector<1x1x1x128xf32>
    tpu.vector_store %arg4[%c0_50, %c1_51, %c0_52, %c0_53], %100 {strides = array<i32>} : memref<1x2x1x128xf32, #tpu.memory_space<vmem>>, vector<1x1x1x128xf32>,
    return
  }
  func.func @transform_0(%arg0: i32, %arg1: i32) -> (i32, i32, i32) {
    %c1_i32 = arith.constant 1 : i32
    %0 = arith.muli %arg0, %c1_i32 : i32
    %1 = arith.addi %0, %arg1 : i32
    %c0_i32 = arith.constant 0 : i32
    %2 = arith.minsi %1, %c0_i32 : i32
    %c0_i32_0 = arith.constant 0 : i32
    %c0_i32_1 = arith.constant 0 : i32
    %c0_i32_2 = arith.constant 0 : i32
    return %c0_i32_0, %2, %c0_i32_1 : i32, i32, i32
  }
  func.func @transform_1(%arg0: i32, %arg1: i32) -> (i32, i32) {
    %c1_i32 = arith.constant 1 : i32
    %0 = arith.muli %arg0, %c1_i32 : i32
    %1 = arith.addi %0, %arg1 : i32
    %c0_i32 = arith.constant 0 : i32
    %2 = arith.minsi %1, %c0_i32 : i32
    %c0_i32_0 = arith.constant 0 : i32
    %c0_i32_1 = arith.constant 0 : i32
    return %2, %c0_i32_0 : i32, i32
  }
  func.func @transform_2(%arg0: i32, %arg1: i32) -> (i32, i32, i32, i32) {
    %c0_i32 = arith.constant 0 : i32
    %c0_i32_0 = arith.constant 0 : i32
    %c0_i32_1 = arith.constant 0 : i32
    %c0_i32_2 = arith.constant 0 : i32
    return %arg0, %c0_i32, %c0_i32_0, %c0_i32_1 : i32, i32, i32, i32
  }
}

</mosaic_0001>

<llo_original>
// kernel: _masked_focal_loss_fwd.1
$region0: #{_masked_focal_loss_fwd.1}
  #allocation0 [shape = 'u32[]', space=smem, size = 0x4, offset = 0x4, fixed_abs, tag = 'smem constant byte address 0x4 - core index']
  #allocation1 [shape = 'u32[144,128]{1,0:T(1,128)}', space=vmem, size = 0x12000, scoped, tag = 'internal scratch']
  %s0 = inlined_call_operand.vmem [shape: f32[5,1,128], index: 0, kind: input, shape index: {}]
  %s1 = inlined_call_operand.vmem [shape: s32[1,128], index: 1, kind: input, shape index: {}]
  %s2 = inlined_call_operand.vmem [shape: f32[1,2,1,128], index: 2, kind: output, shape index: {}]
  %s3 = sld [smem:[#allocation0]]
  $region22: #{_masked_focal_loss_fwd.1} parent=0
    _
  %s5 = ssub.s32 1, %s3
  %s6 = scalar_select 0, %s5, %s3
  // Predicated region
  $region2: #{_masked_focal_loss_fwd.1} parent=0 // pred_check
    _
  $region3: #{_masked_focal_loss_fwd.1} parent=0 // pred_check_branch
    %8 = sbr.rel (0) target = $region5
  $region4: #{_masked_focal_loss_fwd.1} parent=0 // pred_region
    %s9 = sadd.s32 0, 0
    %p10 = scmp.lt.s32.totalorder %s9, 0
    %s11 = scalar_select %p10, %s9, 0
    %p12 = scmp.lt.s32.totalorder %s11, 0
    %s13 = scalar_select %p12, %s11, 0
    %s14 = scalar_lea.vmem %s0, %s13
    %s15 = sadd.s32 0, 0
    %p16 = scmp.lt.s32.totalorder %s15, 0
    %s17 = scalar_select %p16, %s15, 0
  $region5: #{_masked_focal_loss_fwd.1} parent=0 // pred_fallthru
    _
  // Predicated region
  $region6: #{_masked_focal_loss_fwd.1} parent=0 // pred_check
    _
  $region7: #{_masked_focal_loss_fwd.1} parent=0 // pred_check_branch
    %19 = sbr.rel (0) target = $region9
  $region8: #{_masked_focal_loss_fwd.1} parent=0 // pred_region
    %s20 = sadd.s32 0, 0
    %p21 = scmp.lt.s32.totalorder %s20, 0
    %s22 = scalar_select %p21, %s20, 0
    %p23 = scmp.lt.s32.totalorder %s22, 0
    %s24 = scalar_select %p23, %s22, 0
    %s25 = scalar_lea.vmem %s1, %s24
    %s26 = sadd.s32 0, 0
    %p27 = scmp.lt.s32.totalorder %s26, 0
    %s28 = scalar_select %p27, %s26, 0
  $region9: #{_masked_focal_loss_fwd.1} parent=0 // pred_fallthru
    _
  %s29 = sadd.s32 0, 0
  %p30 = scmp.lt.s32.totalorder %s29, 0
  %s31 = scalar_select %p30, %s29, 0
  %p32 = scmp.lt.s32.totalorder %s31, 0
  %s33 = scalar_select %p32, %s31, 0
  %s34 = scalar_lea.vmem %s0, %s33
  %s35 = sadd.s32 0, 0
  %p36 = scmp.lt.s32.totalorder %s35, 0
  %s37 = scalar_select %p36, %s35, 0
  %p38 = scmp.lt.s32.totalorder %s37, 0
  %s39 = scalar_select %p38, %s37, 0
  %s40 = scalar_lea.vmem %s1, %s39
  %s41 = sadd.s32 0, 0
  %p42 = scmp.lt.s32.totalorder %s41, 0
  %s43 = scalar_select %p42, %s41, 0
  %p44 = scmp.lt.s32.totalorder %s43, 0
  %s45 = scalar_select %p44, %s43, 0
  %s46 = scalar_lea.vmem %s0, %s45
  %s47 = sadd.s32 0, 0
  %p48 = scmp.lt.s32.totalorder %s47, 0
  %s49 = scalar_select %p48, %s47, 0
  %s50 = sadd.s32 0, 0
  %p51 = scmp.lt.s32.totalorder %s50, 0
  %s52 = scalar_select %p51, %s50, 0
  %p53 = scmp.lt.s32.totalorder %s52, 0
  %s54 = scalar_select %p53, %s52, 0
  %s55 = scalar_lea.vmem %s1, %s54
  %s56 = sadd.s32 0, 0
  %p57 = scmp.lt.s32.totalorder %s56, 0
  %s58 = scalar_select %p57, %s56, 0
  %p59 = scmp.eq.s32.totalorder 0, 0
  // Predicated region
  $region10: #{_masked_focal_loss_fwd.1} parent=0 // pred_check
    %p60 = pneg %p59
  $region11: #{_masked_focal_loss_fwd.1} parent=0 // pred_check_branch
    %62 = sbr.rel (%p60) target = $region13
  $region12: #{_masked_focal_loss_fwd.1} parent=0 // pred_region
    %63 = vst [vmem:[%s2] sm:$0x1] 0.0
    %64 = vst [vmem:[%s2 + $0x1] sm:$0x1] 0.0
  $region13: #{_masked_focal_loss_fwd.1} parent=0 // pred_fallthru
    _
  %v65 = vld [vmem:[%s55] sm:$0x1]
  %v66 = vld [vmem:[%s46] sm:$0x1]
  %s67 = scalar_lea.vmem %s46, 1
  %v68 = vld [vmem:[%s67] sm:$0x1]
  %v69 = vmax.f32 %v66, %v68
  %s70 = scalar_lea.vmem %s46, 2
  %v71 = vld [vmem:[%s70] sm:$0x1]
  %v72 = vmax.f32 %v69, %v71
  %s73 = scalar_lea.vmem %s46, 3
  %v74 = vld [vmem:[%s73] sm:$0x1]
  %v75 = vmax.f32 %v72, %v74
  %s76 = scalar_lea.vmem %s46, 4
  %v77 = vld [vmem:[%s76] sm:$0x1]
  %v78 = vmax.f32 %v75, %v77
  %v79 = vsub.f32 %v66, %v78
  %v80 = vmul.f32 %v79, 1.442695
  %v81 = vpow.pop %v80
  %vm82 = vcmp.eq.s32.totalorder %v65, 0
  %v83 = vsel %vm82, %v81, 0.0
  %v84 = vsel %vm82, %v66, 0.0
  %v85 = vsub.f32 %v68, %v78
  %v86 = vmul.f32 %v85, 1.442695
  %v87 = vpow.pop %v86
  %v88 = vadd.f32 %v81, %v87
  %vm89 = vcmp.eq.s32.totalorder %v65, 1
  %v90 = vsel %vm89, %v87, %v83
  %v91 = vsel %vm89, %v68, %v84
  %v92 = vsub.f32 %v71, %v78
  %v93 = vmul.f32 %v92, 1.442695
  %v94 = vpow.pop %v93
  %v95 = vadd.f32 %v88, %v94
  %vm96 = vcmp.eq.s32.totalorder %v65, 2
  %v97 = vsel %vm96, %v94, %v90
  %v98 = vsel %vm96, %v71, %v91
  %v99 = vsub.f32 %v74, %v78
  %v100 = vmul.f32 %v99, 1.442695
  %v101 = vpow.pop %v100
  %v102 = vadd.f32 %v95, %v101
  %vm103 = vcmp.eq.s32.totalorder %v65, 3
  %v104 = vsel %vm103, %v101, %v97
  %v105 = vsel %vm103, %v74, %v98
  %v106 = vsub.f32 %v77, %v78
  %v107 = vmul.f32 %v106, 1.442695
  %v108 = vpow.pop %v107
  %v109 = vadd.f32 %v102, %v108
  %vm110 = vcmp.eq.s32.totalorder %v65, 4
  %v111 = vsel %vm110, %v108, %v104
  %v112 = vsel %vm110, %v77, %v105
  %v113 = vsub.f32 %v112, %v78
  %v114 = vlog2.pop %v109
  %v115 = vmul.f32 %v114, 0.6931472
  %v116 = vsub.f32 %v113, %v115
  %v117 = vmax.f32 %v116, -13.815511
  %v118 = vmin.f32 %v117, -1.0000005e-06
  %v119 = vrcp.pop %v109
  %v120 = vmul.f32 %v111, %v119
  %v121 = vmax.f32 %v120, 1e-06
  %v122 = vmin.f32 %v121, 0.999999
  %v123 = vsub.f32 1.0, %v122
  %v124 = vmul.f32 %v123, %v123
  %vm125 = vcmp.ge.s32.totalorder %v65, 0
  %v126 = vsel %vm125, 1, 0
  %v127 = vcvt.s32.f32 %v126
  %v128 = vsub.f32 0.0, %v118
  %v129 = vmul.f32 %v128, %v124
  %v130 = vmul.f32 %v129, %v127
  %v131 = vmul.f32 %v130, 0.25
  %v132 = vld [vmem:[%s2] sm:$0x1]
  %v133 = vadd.f32 %v132, %v131
  %134 = vst [vmem:[%s2] sm:$0x1] %v133
  %s135 = scalar_lea.vmem %s2, 1
  %v136 = vld [vmem:[%s135] sm:$0x1]
  %v137 = vadd.f32 %v136, %v127
  %138 = vst [vmem:[%s135] sm:$0x1] %v137
  // Predicated region
  $region14: #{_masked_focal_loss_fwd.1} parent=0 // pred_check
    _
  $region15: #{_masked_focal_loss_fwd.1} parent=0 // pred_check_branch
    %140 = sbr.rel (0) target = $region17
  $region16: #{_masked_focal_loss_fwd.1} parent=0 // pred_region
    _
  $region17: #{_masked_focal_loss_fwd.1} parent=0 // pred_fallthru
    _
  // Predicated region
  $region18: #{_masked_focal_loss_fwd.1} parent=0 // pred_check
    _
  $region19: #{_masked_focal_loss_fwd.1} parent=0 // pred_check_branch
    %142 = sbr.rel (0) target = $region21
  $region20: #{_masked_focal_loss_fwd.1} parent=0 // pred_region
    _
  $region21: #{_masked_focal_loss_fwd.1} parent=0 // pred_fallthru
    _

</llo_original>
